<compile_context>
chip_gen: v5e
topology: v5e:2x2
jax: 0.10.0
libtpu: 0.0.40
codegen_flags: <defaults>
</compile_context>

<pallas_src>
import numpy as np
import jax
import jax.numpy as jnp
from jax import lax
from jax.experimental import pallas as pl
from jax.experimental.pallas import tpu as pltpu

DATA_WEIGHT = 1.0
PHYSICS_WEIGHT = 0.1

# Padding-aware budget for the 2 inputs x 2 pipeline buffers of one (TB, HW)
# block.  48 MiB scoped limit leaves headroom under v7x's 64 MiB physical VMEM;
# v5e/v6e (128 MiB) are unaffected.
_INPUT_VMEM_BUDGET_BYTES = 24 * 1024 * 1024
_VMEM_LIMIT_BYTES = 48 * 1024 * 1024
_ROW_CHUNK = 32           # rows (flattened velocity maps) per inner chunk
_MAX_CHUNKS_PER_STEP = 8  # bound on the static inner unroll (TB = RC * NCH)
_NSPLIT = 2               # leading "parallel" axis (2 TensorCores on v7x)


def _round_up(x, m):
    return (x + m - 1) // m * m


def _sublane_multiple(itemsize):
    # VMEM tiling: (8,128) for 4-byte, (16,128) for 2-byte, (32,128) for 1-byte.
    return {4: 8, 2: 16, 1: 32}.get(itemsize, 8)


def _pick_tiling(bc, hw, itemsize):
    """Row tiling of the lane-dense (BC, HW) layout, VMEM-padding aware."""
    hw_pad = _round_up(hw, 128)
    if bc <= _ROW_CHUNK:
        # Block second-to-last dim == full array dim -> always a legal BlockSpec.
        rc, nch = bc, 1
    else:
        rc = _ROW_CHUNK
        # True (padded) VMEM footprint of the double-buffered inputs per chunk.
        per_chunk = 4 * _round_up(rc, _sublane_multiple(itemsize)) * hw_pad * itemsize
        nch = max(1, min(_MAX_CHUNKS_PER_STEP,
                         _INPUT_VMEM_BUDGET_BYTES // per_chunk,
                         bc // rc))
    tb = rc * nch
    nb = pl.cdiv(bc, tb)                 # batch blocks; ragged tail masked in-kernel
    nsplit = _NSPLIT if nb >= _NSPLIT else 1
    nb_inner = pl.cdiv(nb, nsplit)
    return rc, nch, tb, nb, nsplit, nb_inner


def _make_kernel(*, bc, h, w, hw, tb, rc, nch, nb, nb_inner, nsplit, use_roll):
    ragged = (nb_inner * nsplit != nb) or (nb * tb != bc)

    def shift_left(p, k):
        # result[..., c] = p[..., (c + k) % hw]; wrapped lanes are zero-weighted.
        if use_roll:
            return pltpu.roll(p, hw - k, 1)         # XLU rotate (free slot)
        return jnp.concatenate([p[:, k:], p[:, :k]], axis=1)

    def kernel(pred_ref, targ_ref, w_ref, out_ref, acc_d, acc_p):
        s = pl.program_id(0)
        i = pl.program_id(1)

        @pl.when(i == 0)
        def _init():
            acc_d[...] = jnp.zeros_like(acc_d)
            acc_p[...] = jnp.zeros_like(acc_p)

        wx = w_ref[0:1, :]   # (1, HW): 1/Nx on lanes with a valid dH pair, else 0
        wz = w_ref[1:2, :]   # (1, HW): 1/Nz on lanes with a valid dW pair, else 0

        blk = s * nb_inner + i          # intended (unclamped) batch-block index

        for j in range(nch):            # static, short unrolled loop over row chunks
            p = pred_ref[pl.ds(j * rc, rc), :].astype(jnp.float32)
            t = targ_ref[pl.ds(j * rc, rc), :].astype(jnp.float32)

            if ragged:
                rows = (lax.broadcasted_iota(jnp.int32, (rc, 1), 0)
                        + (blk * tb + j * rc))
                ok = rows < bc

            data = jnp.abs(p - t)
            if ragged:
                data = jnp.where(ok, data, 0.0)
            acc_d[...] += data

            terms = []
            if h > 1:
                dx = shift_left(p, w) - p
                terms.append(dx * dx * wx)
            if w > 1:
                dz = shift_left(p, 1) - p
                terms.append(dz * dz * wz)
            if terms:
                phys = terms[0] if len(terms) == 1 else terms[0] + terms[1]
                if ragged:
                    phys = jnp.where(ok, phys, 0.0)
                acc_p[...] += phys

        # Single cross-sublane reduce + output store per batch slice only.
        @pl.when(i == pl.num_programs(1) - 1)
        def _finalize():
            d = jnp.sum(acc_d[...], axis=0, keepdims=True)
            q = jnp.sum(acc_p[...], axis=0, keepdims=True)
            out_ref[...] = jnp.concatenate([d, q], axis=0)[None]

    return kernel


def fwi_loss(predicted_velocity, target_velocity, seismic_data=None,
             data_weight=DATA_WEIGHT, physics_weight=PHYSICS_WEIGHT):
    """Returns (total_loss, loss_components) matching FWILoss.forward semantics."""
    B, C, H, W = predicted_velocity.shape
    BC, HW = B * C, H * W
    n = BC * H * W

    # Lane-dense streaming layout (free reshape of contiguous NCHW).
    pred = predicted_velocity.reshape(BC, HW)
    targ = target_velocity.reshape(BC, HW)

    itemsize = max(pred.dtype.itemsize, targ.dtype.itemsize)
    rc, nch, tb, nb, nsplit, nb_inner = _pick_tiling(BC, HW, itemsize)
    use_roll = (HW % 128 == 0)

    # Static lane weights: fold dH/dW validity masks and the mean denominators
    # into one (2, HW) f32 constant (computed once at trace time).
    col = np.arange(HW)
    wx = np.where(col < (H - 1) * W,
                  1.0 / (BC * (H - 1) * W) if H > 1 else 0.0, 0.0)
    wz = np.where(col % W != W - 1,
                  1.0 / (BC * H * (W - 1)) if W > 1 else 0.0, 0.0)
    lane_w = jnp.asarray(np.stack([wx, wz]).astype(np.float32))       # (2, HW)

    kernel = _make_kernel(bc=BC, h=H, w=W, hw=HW, tb=tb, rc=rc, nch=nch,
                          nb=nb, nb_inner=nb_inner, nsplit=nsplit,
                          use_roll=use_roll)

    def block_map(s, i):
        # Clamp keeps overhang grid steps (ragged nb split) in-bounds; their
        # contributions are zeroed by the in-kernel row mask.
        return (jnp.minimum(s * nb_inner + i, nb - 1), 0)

    parts = pl.pallas_call(
        kernel,
        out_shape=jax.ShapeDtypeStruct((nsplit, 2, HW), jnp.float32),
        grid_spec=pltpu.PrefetchScalarGridSpec(
            num_scalar_prefetch=0,
            grid=(nsplit, nb_inner),
            in_specs=[
                pl.BlockSpec((tb, HW), block_map),
                pl.BlockSpec((tb, HW), block_map),
                pl.BlockSpec((2, HW), lambda s, i: (0, 0)),
            ],
            out_specs=pl.BlockSpec((1, 2, HW), lambda s, i: (s, 0, 0)),
            scratch_shapes=[
                pltpu.VMEM((rc, HW), jnp.float32),   # partial sums of |p - t|
                pltpu.VMEM((rc, HW), jnp.float32),   # partial weighted dH^2+dW^2
            ],
        ),
        compiler_params=pltpu.CompilerParams(
            # Leading axis owns disjoint output blocks -> v7x can split it
            # across its 2 TensorCores; inner axis carries the accumulators.
            dimension_semantics=("parallel", "arbitrary"),
            vmem_limit_bytes=_VMEM_LIMIT_BYTES,
        ),
        cost_estimate=pl.CostEstimate(
            flops=12 * n,
            transcendentals=0,
            bytes_accessed=n * (pred.dtype.itemsize + targ.dtype.itemsize)
                           + nsplit * 2 * HW * 4,
        ),
    )(pred, targ, lane_w)

    data_loss = jnp.sum(parts[:, 0, :]) / n          # nn.L1Loss (mean reduction)

    # TODO(synk): model.compute_physics_loss lives outside this module; implemented
    # here as the standard FWI spatial-smoothness prior mean(dH^2) + mean(dW^2) on
    # the predicted velocity (seismic_data unused by this prior).
    physics_loss = jnp.sum(parts[:, 1, :])

    total_loss = data_weight * data_loss + physics_weight * physics_loss
    # jnp scalars (no .item()/float()): keeps the wrapper jit-able, no host syncs.
    loss_components = {
        'total_loss': total_loss,
        'data_loss': data_loss,
        'physics_loss': physics_loss,
    }
    return total_loss, loss_components


def _reference(pred, targ, data_weight=DATA_WEIGHT, physics_weight=PHYSICS_WEIGHT):
    pred = pred.astype(jnp.float32)
    targ = targ.astype(jnp.float32)
    data_loss = jnp.mean(jnp.abs(pred - targ))
    dx = pred[:, :, 1:, :] - pred[:, :, :-1, :]
    dz = pred[:, :, :, 1:] - pred[:, :, :, :-1]
    physics_loss = jnp.mean(dx * dx) + jnp.mean(dz * dz)
    return data_weight * data_loss + physics_weight * physics_loss


if __name__ == "__main__":
    key = jax.random.PRNGKey(0)

    # Primary case (matches the module's small-shape example).
    k1, k2, k3 = jax.random.split(key, 3)
    B, C, H, W = 2, 1, 16, 16
    predicted_velocity = jax.random.normal(k1, (B, C, H, W), dtype=jnp.float32)
    target_velocity = jax.random.normal(k2, (B, C, H, W), dtype=jnp.float32)
    seismic_data = jax.random.normal(k3, (2, 4, 16, 16), dtype=jnp.float32)  # unused by prior

    total_loss, components = jax.jit(fwi_loss)(
        predicted_velocity, target_velocity, seismic_data)
    total_loss = jax.block_until_ready(total_loss)
    jax.block_until_ready(components)
    ref = jax.block_until_ready(_reference(predicted_velocity, target_velocity))
    assert abs(float(total_loss) - float(ref)) < 3e-5, (float(total_loss), float(ref))

    def _check(shape, dtype, seed):
        ka, kb = jax.random.split(jax.random.fold_in(key, seed))
        p = jax.random.normal(ka, shape, dtype=jnp.float32).astype(dtype)
        t = jax.random.normal(kb, shape, dtype=jnp.float32).astype(dtype)
        tot, comps = jax.jit(fwi_loss)(p, t)
        tot = jax.block_until_ready(tot)
        jax.block_until_ready(comps)
        r = jax.block_until_ready(_reference(p, t))
        assert abs(float(tot) - float(r)) < 3e-5, (shape, str(dtype), float(tot), float(r))

    # Extra coverage: unaligned lane width (slice/concat fallback), bf16 in-kernel
    # cast, and a ragged batch tail with the 2-way parallel partial-sum path.
    _check((3, 2, 10, 13), jnp.float32, 1)
    _check((4, 1, 16, 16), jnp.bfloat16, 2)
    _check((8, 5, 16, 16), jnp.float32, 3)

    print("KERNEL_OK")
</pallas_src>

<mosaic_0001>
module attributes {stable_mosaic.version = 11 : i64} {
  func.func @kernel(%arg0: i32, %arg1: i32, %arg2: memref<2x256xf32, #tpu.memory_space<vmem>>, %arg3: memref<2x256xf32, #tpu.memory_space<vmem>>, %arg4: memref<2x256xf32, #tpu.memory_space<vmem>>, %arg5: memref<1x2x256xf32, #tpu.memory_space<vmem>>, %arg6: memref<2x256xf32, #tpu.memory_space<vmem>>, %arg7: memref<2x256xf32, #tpu.memory_space<vmem>>) attributes {dimension_semantics = [#tpu.dimension_semantics<parallel>, #tpu.dimension_semantics<arbitrary>], iteration_bounds = array<i64: 1, 1>, scalar_prefetch = 0 : i64, scratch_operands = 2 : i64, tpu.core_type = #tpu.core_type<tc>, window_params = [{transform_indices = @transform_0, window_bounds = array<i64: 2, 256>}, {transform_indices = @transform_1, window_bounds = array<i64: 2, 256>}, {pipeline_mode = #tpu.pipeline_mode<synchronous>, transform_indices = @transform_2, window_bounds = array<i64: 2, 256>}, {transform_indices = @transform_3, window_bounds = array<i64: 1, 2, 256>}]} {
    %c0_i32 = arith.constant 0 : i32
    %0 = arith.cmpi eq, %arg1, %c0_i32 : i32
    %1 = arith.extui %0 : i1 to i32
    %c0_i32_0 = arith.constant 0 : i32
    %2 = arith.cmpi ne, %1, %c0_i32_0 : i32
    scf.if %2 {
      %cst = arith.constant 0.000000e+00 : f32
      %29 = vector.broadcast %cst : f32 to vector<2x256xf32>
      %c0_17 = arith.constant 0 : index
      %c0_18 = arith.constant 0 : index
      %30 = vector.load %arg6[%c0_17, %c0_18] : memref<2x256xf32, #tpu.memory_space<vmem>>, vector<2x256xf32>
      tpu.vector_store %arg6[%c0_17, %c0_18], %29 {strides = array<i32>} : memref<2x256xf32, #tpu.memory_space<vmem>>, vector<2x256xf32>,
      %cst_19 = arith.constant 0.000000e+00 : f32
      %31 = vector.broadcast %cst_19 : f32 to vector<2x256xf32>
      %c0_20 = arith.constant 0 : index
      %c0_21 = arith.constant 0 : index
      %32 = vector.load %arg7[%c0_20, %c0_21] : memref<2x256xf32, #tpu.memory_space<vmem>>, vector<2x256xf32>
      tpu.vector_store %arg7[%c0_20, %c0_21], %31 {strides = array<i32>} : memref<2x256xf32, #tpu.memory_space<vmem>>, vector<2x256xf32>,
    } else {
    }
    %c0 = arith.constant 0 : index
    %c0_1 = arith.constant 0 : index
    %3 = vector.load %arg4[%c0, %c0_1] : memref<2x256xf32, #tpu.memory_space<vmem>>, vector<1x256xf32>
    %c1 = arith.constant 1 : index
    %c0_2 = arith.constant 0 : index
    %4 = vector.load %arg4[%c1, %c0_2] : memref<2x256xf32, #tpu.memory_space<vmem>>, vector<1x256xf32>
    %c0_3 = arith.constant 0 : index
    %c0_4 = arith.constant 0 : index
    %5 = vector.load %arg2[%c0_3, %c0_4] : memref<2x256xf32, #tpu.memory_space<vmem>>, vector<2x256xf32>
    %c0_5 = arith.constant 0 : index
    %c0_6 = arith.constant 0 : index
    %6 = vector.load %arg3[%c0_5, %c0_6] : memref<2x256xf32, #tpu.memory_space<vmem>>, vector<2x256xf32>
    %7 = arith.subf %5, %6 : vector<2x256xf32>
    %8 = math.absf %7 : vector<2x256xf32>
    %c0_7 = arith.constant 0 : index
    %c0_8 = arith.constant 0 : index
    %9 = vector.load %arg6[%c0_7, %c0_8] : memref<2x256xf32, #tpu.memory_space<vmem>>, vector<2x256xf32>
    %10 = arith.addf %9, %8 : vector<2x256xf32>
    %c0_9 = arith.constant 0 : index
    %c0_10 = arith.constant 0 : index
    %11 = vector.load %arg6[%c0_9, %c0_10] : memref<2x256xf32, #tpu.memory_space<vmem>>, vector<2x256xf32>
    tpu.vector_store %arg6[%c0_9, %c0_10], %10 {strides = array<i32>} : memref<2x256xf32, #tpu.memory_space<vmem>>, vector<2x256xf32>,
    %c240_i32 = arith.constant 240 : i32
    %12 = tpu.dynamic_rotate %5 by %c240_i32 dim 1 : vector<2x256xf32>, i32 -> vector<2x256xf32>
    %13 = arith.subf %12, %5 : vector<2x256xf32>
    %14 = arith.mulf %13, %13 : vector<2x256xf32>
    %15 = vector.broadcast %3 : vector<1x256xf32> to vector<2x256xf32>
    %16 = arith.mulf %14, %15 : vector<2x256xf32>
    %c255_i32 = arith.constant 255 : i32
    %17 = tpu.dynamic_rotate %5 by %c255_i32 dim 1 : vector<2x256xf32>, i32 -> vector<2x256xf32>
    %18 = arith.subf %17, %5 : vector<2x256xf32>
    %19 = arith.mulf %18, %18 : vector<2x256xf32>
    %20 = vector.broadcast %4 : vector<1x256xf32> to vector<2x256xf32>
    %21 = arith.mulf %19, %20 : vector<2x256xf32>
    %22 = arith.addf %16, %21 : vector<2x256xf32>
    %c0_11 = arith.constant 0 : index
    %c0_12 = arith.constant 0 : index
    %23 = vector.load %arg7[%c0_11, %c0_12] : memref<2x256xf32, #tpu.memory_space<vmem>>, vector<2x256xf32>
    %24 = arith.addf %23, %22 : vector<2x256xf32>
    %c0_13 = arith.constant 0 : index
    %c0_14 = arith.constant 0 : index
    %25 = vector.load %arg7[%c0_13, %c0_14] : memref<2x256xf32, #tpu.memory_space<vmem>>, vector<2x256xf32>
    tpu.vector_store %arg7[%c0_13, %c0_14], %24 {strides = array<i32>} : memref<2x256xf32, #tpu.memory_space<vmem>>, vector<2x256xf32>,
    %c0_i32_15 = arith.constant 0 : i32
    %26 = arith.cmpi eq, %arg1, %c0_i32_15 : i32
    %27 = arith.extui %26 : i1 to i32
    %c0_i32_16 = arith.constant 0 : i32
    %28 = arith.cmpi ne, %27, %c0_i32_16 : i32
    scf.if %28 {
      %c0_17 = arith.constant 0 : index
      %c0_18 = arith.constant 0 : index
      %29 = vector.load %arg6[%c0_17, %c0_18] : memref<2x256xf32, #tpu.memory_space<vmem>>, vector<2x256xf32>
      %cst = arith.constant dense<0.000000e+00> : vector<256xf32>
      %30 = vector.multi_reduction <add>, %29, %cst [0] : vector<2x256xf32> to vector<256xf32>
      %31 = vector.shape_cast %30 : vector<256xf32> to vector<1x256xf32>
      %c0_19 = arith.constant 0 : index
      %c0_20 = arith.constant 0 : index
      %32 = vector.load %arg7[%c0_19, %c0_20] : memref<2x256xf32, #tpu.memory_space<vmem>>, vector<2x256xf32>
      %cst_21 = arith.constant dense<0.000000e+00> : vector<256xf32>
      %33 = vector.multi_reduction <add>, %32, %cst_21 [0] : vector<2x256xf32> to vector<256xf32>
      %34 = vector.shape_cast %33 : vector<256xf32> to vector<1x256xf32>
      %35 = tpu.concatenate %31, %34 in 0 : vector<1x256xf32>, vector<1x256xf32> -> vector<2x256xf32>
      %36 = vector.shape_cast %35 : vector<2x256xf32> to vector<1x2x256xf32>
      %c0_22 = arith.constant 0 : index
      %c0_23 = arith.constant 0 : index
      %c0_24 = arith.constant 0 : index
      %37 = vector.load %arg5[%c0_22, %c0_23, %c0_24] : memref<1x2x256xf32, #tpu.memory_space<vmem>>, vector<1x2x256xf32>
      tpu.vector_store %arg5[%c0_22, %c0_23, %c0_24], %36 {strides = array<i32>} : memref<1x2x256xf32, #tpu.memory_space<vmem>>, vector<1x2x256xf32>,
    } else {
    }
    return
  }
  func.func @transform_0(%arg0: i32, %arg1: i32) -> (i32, i32) {
    %c1_i32 = arith.constant 1 : i32
    %0 = arith.muli %arg0, %c1_i32 : i32
    %1 = arith.addi %0, %arg1 : i32
    %c0_i32 = arith.constant 0 : i32
    %2 = arith.minsi %1, %c0_i32 : i32
    %c0_i32_0 = arith.constant 0 : i32
    %c0_i32_1 = arith.constant 0 : i32
    return %2, %c0_i32_0 : i32, i32
  }
  func.func @transform_1(%arg0: i32, %arg1: i32) -> (i32, i32) {
    %c1_i32 = arith.constant 1 : i32
    %0 = arith.muli %arg0, %c1_i32 : i32
    %1 = arith.addi %0, %arg1 : i32
    %c0_i32 = arith.constant 0 : i32
    %2 = arith.minsi %1, %c0_i32 : i32
    %c0_i32_0 = arith.constant 0 : i32
    %c0_i32_1 = arith.constant 0 : i32
    return %2, %c0_i32_0 : i32, i32
  }
  func.func @transform_2(%arg0: i32, %arg1: i32) -> (i32, i32) {
    %c0_i32 = arith.constant 0 : i32
    %c0_i32_0 = arith.constant 0 : i32
    %c0_i32_1 = arith.constant 0 : i32
    return %c0_i32, %c0_i32_0 : i32, i32
  }
  func.func @transform_3(%arg0: i32, %arg1: i32) -> (i32, i32, i32) {
    %c0_i32 = arith.constant 0 : i32
    %c0_i32_0 = arith.constant 0 : i32
    %c0_i32_1 = arith.constant 0 : i32
    return %arg0, %c0_i32, %c0_i32_0 : i32, i32, i32
  }
}

</mosaic_0001>

<llo_original>
// kernel: fwi_loss.1
$region0: #{fwi_loss.1}
  #allocation0 [shape = 'u32[]', space=smem, size = 0x4, offset = 0x4, fixed_abs, tag = 'smem constant byte address 0x4 - core index']
  #allocation1 [shape = 'u32[72,128]{1,0:T(1,128)}', space=vmem, size = 0x9000, scoped, tag = 'internal scratch']
  #allocation2 [shape = 'f32[2,256]{1,0:T(2,128)}', space=vmem, size = 0x800, scoped, tag = 'scratch operand']
  #allocation3 [shape = 'f32[2,256]{1,0:T(2,128)}', space=vmem, size = 0x800, scoped, tag = 'scratch operand']
  %s0 = inlined_call_operand.vmem [shape: f32[2,256], index: 0, kind: input, shape index: {}]
  %s1 = inlined_call_operand.vmem [shape: f32[2,256], index: 1, kind: input, shape index: {}]
  %s2 = inlined_call_operand.vmem [shape: f32[2,256], index: 2, kind: input, shape index: {}]
  %s3 = inlined_call_operand.vmem [shape: f32[1,2,256], index: 3, kind: output, shape index: {}]
  %s4 = sld [smem:[#allocation0]]
  $region30: #{fwi_loss.1} parent=0
    _
  %s6 = ssub.s32 1, %s4
  %s7 = scalar_select 0, %s6, %s4
  // Predicated region
  $region2: #{fwi_loss.1} parent=0 // pred_check
    _
  $region3: #{fwi_loss.1} parent=0 // pred_check_branch
    %9 = sbr.rel (0) target = $region5
  $region4: #{fwi_loss.1} parent=0 // pred_region
    %s10 = sadd.s32 0, 0
    %p11 = scmp.lt.s32.totalorder %s10, 0
    %s12 = scalar_select %p11, %s10, 0
    %p13 = scmp.lt.s32.totalorder %s12, 0
    %s14 = scalar_select %p13, %s12, 0
    %s15 = smul.addr %s14, 2
    %s16 = smul.addr %s15, 2
    %s17 = scalar_lea.vmem %s0, %s16
    %s18 = sadd.s32 0, 0
    %p19 = scmp.lt.s32.totalorder %s18, 0
    %s20 = scalar_select %p19, %s18, 0
  $region5: #{fwi_loss.1} parent=0 // pred_fallthru
    _
  // Predicated region
  $region6: #{fwi_loss.1} parent=0 // pred_check
    _
  $region7: #{fwi_loss.1} parent=0 // pred_check_branch
    %22 = sbr.rel (0) target = $region9
  $region8: #{fwi_loss.1} parent=0 // pred_region
    %s23 = sadd.s32 0, 0
    %p24 = scmp.lt.s32.totalorder %s23, 0
    %s25 = scalar_select %p24, %s23, 0
    %p26 = scmp.lt.s32.totalorder %s25, 0
    %s27 = scalar_select %p26, %s25, 0
    %s28 = smul.addr %s27, 2
    %s29 = smul.addr %s28, 2
    %s30 = scalar_lea.vmem %s1, %s29
    %s31 = sadd.s32 0, 0
    %p32 = scmp.lt.s32.totalorder %s31, 0
    %s33 = scalar_select %p32, %s31, 0
  $region9: #{fwi_loss.1} parent=0 // pred_fallthru
    _
  // Predicated region
  $region10: #{fwi_loss.1} parent=0 // pred_check
    _
  $region11: #{fwi_loss.1} parent=0 // pred_check_branch
    %35 = sbr.rel (0) target = $region13
  $region12: #{fwi_loss.1} parent=0 // pred_region
    _
  $region13: #{fwi_loss.1} parent=0 // pred_fallthru
    _
  %s36 = sadd.s32 0, 0
  %p37 = scmp.lt.s32.totalorder %s36, 0
  %s38 = scalar_select %p37, %s36, 0
  %p39 = scmp.lt.s32.totalorder %s38, 0
  %s40 = scalar_select %p39, %s38, 0
  %s41 = smul.addr %s40, 2
  %s42 = smul.addr %s41, 2
  %s43 = scalar_lea.vmem %s0, %s42
  %s44 = sadd.s32 0, 0
  %p45 = scmp.lt.s32.totalorder %s44, 0
  %s46 = scalar_select %p45, %s44, 0
  %p47 = scmp.lt.s32.totalorder %s46, 0
  %s48 = scalar_select %p47, %s46, 0
  %s49 = smul.addr %s48, 2
  %s50 = smul.addr %s49, 2
  %s51 = scalar_lea.vmem %s1, %s50
  %s52 = sadd.s32 0, 0
  %p53 = scmp.lt.s32.totalorder %s52, 0
  %s54 = scalar_select %p53, %s52, 0
  %p55 = scmp.lt.s32.totalorder %s54, 0
  %s56 = scalar_select %p55, %s54, 0
  %s57 = smul.addr %s56, 2
  %s58 = smul.addr %s57, 2
  %s59 = scalar_lea.vmem %s0, %s58
  %s60 = sadd.s32 0, 0
  %p61 = scmp.lt.s32.totalorder %s60, 0
  %s62 = scalar_select %p61, %s60, 0
  %s63 = sadd.s32 0, 0
  %p64 = scmp.lt.s32.totalorder %s63, 0
  %s65 = scalar_select %p64, %s63, 0
  %p66 = scmp.lt.s32.totalorder %s65, 0
  %s67 = scalar_select %p66, %s65, 0
  %s68 = smul.addr %s67, 2
  %s69 = smul.addr %s68, 2
  %s70 = scalar_lea.vmem %s1, %s69
  %s71 = sadd.s32 0, 0
  %p72 = scmp.lt.s32.totalorder %s71, 0
  %s73 = scalar_select %p72, %s71, 0
  %p74 = scmp.eq.s32.totalorder 0, 0
  // Predicated region
  $region14: #{fwi_loss.1} parent=0 // pred_check
    %p75 = pneg %p74
  $region15: #{fwi_loss.1} parent=0 // pred_check_branch
    %77 = sbr.rel (%p75) target = $region17
  $region16: #{fwi_loss.1} parent=0 // pred_region
    %78 = vst [vmem:[#allocation2] sm:$0xf] 0.0
    %79 = vst [vmem:[#allocation3] sm:$0xf] 0.0
  $region17: #{fwi_loss.1} parent=0 // pred_fallthru
    _
  %v80 = vld [vmem:[%s2] ss:$2 sm:$0x3]
  %s81 = scalar_lea.vmem %s2, 1
  %v82 = vld [vmem:[%s81] ss:$2 sm:$0x3]
  %v83 = vld [vmem:[%s59] sm:$0xf]
  %v84 = vld [vmem:[%s70] sm:$0xf]
  %v85 = vsub.f32 %v83, %v84
  %v86 = vand.u32 2147483647, %v85
  %v87 = vld [vmem:[#allocation2] sm:$0xf]
  %v88 = vadd.f32 %v87, %v86
  %89 = vst [vmem:[#allocation2] sm:$0xf] %v88
  %91 = vst [vmem:[#allocation1] ss:$4 sm:$0xff] %v83
  %v92 = vld.sshfl [vmem:[#allocation1] sm:$0xff pattern:$0x73625140]
  %v93 = vld.sshfl [vmem:[#allocation1 + $0x8] sm:$0xff pattern:$0x73625140]
  %96 = vrot.lane.b32.xlu0 %v92, 112
  %v97 = vpop.permute.xlu0 %96
  %98 = vrot.lane.b32.xlu0 %v93, 112
  %v99 = vpop.permute.xlu0 %98
  %v100 = vlaneseq
  %v101 = vand.u32 %v100, 127
  %vm102 = vcmp.lt.s32.totalorder %v101, 112
  %v103 = vsel %vm102, %v97, %v99
  %v104 = vsel %vm102, %v99, %v97
  %105 = vst [vmem:[#allocation1] ss:$4 sm:$0xff] %v83
  %v106 = vld.sshfl [vmem:[#allocation1] sm:$0xff pattern:$0x73625140]
  %v107 = vld.sshfl [vmem:[#allocation1 + $0x8] sm:$0xff pattern:$0x73625140]
  %v110 = vsub.f32 %v103, %v106
  %v111 = vsub.f32 %v104, %v107
  %v112 = vmul.f32 %v110, %v110
  %v113 = vmul.f32 %v111, %v111
  %v115 = vperm.slane %v80, 0
  %v116 = vperm.slane %v80, 1
  %v119 = vmul.f32 %v112, %v115
  %v120 = vmul.f32 %v113, %v116
  %121 = vst [vmem:[#allocation1] ss:$4 sm:$0xff] %v83
  %v122 = vld.sshfl [vmem:[#allocation1] sm:$0xff pattern:$0x73625140]
  %v123 = vld.sshfl [vmem:[#allocation1 + $0x8] sm:$0xff pattern:$0x73625140]
  %126 = vrot.lane.b32.xlu0 %v122, 127
  %v127 = vpop.permute.xlu0 %126
  %128 = vrot.lane.b32.xlu0 %v123, 127
  %v129 = vpop.permute.xlu0 %128
  %vm130 = vcmp.lt.s32.totalorder %v101, 127
  %v131 = vsel %vm130, %v127, %v129
  %v132 = vsel %vm130, %v129, %v127
  %133 = vst [vmem:[#allocation1] ss:$4 sm:$0xff] %v83
  %v134 = vld.sshfl [vmem:[#allocation1] sm:$0xff pattern:$0x73625140]
  %v135 = vld.sshfl [vmem:[#allocation1 + $0x8] sm:$0xff pattern:$0x73625140]
  %v138 = vsub.f32 %v131, %v134
  %v139 = vsub.f32 %v132, %v135
  %v140 = vmul.f32 %v138, %v138
  %v141 = vmul.f32 %v139, %v139
  %v143 = vperm.slane %v82, 0
  %v144 = vperm.slane %v82, 1
  %v147 = vmul.f32 %v140, %v143
  %v148 = vmul.f32 %v141, %v144
  %v149 = vadd.f32 %v119, %v147
  %v150 = vadd.f32 %v120, %v148
  %v151 = vld [vmem:[#allocation3] sm:$0xf]
  %v154 = vrot.slane %v150, 6
  %vm155 = vcmask 1041408
  %v156 = vsel %vm155, %v149, %v154
  %v158 = vadd.f32 %v151, %v156
  %159 = vst [vmem:[#allocation3] sm:$0xf] %v158
  // Predicated region
  $region18: #{fwi_loss.1} parent=0 // pred_check
    %p160 = pneg %p74
  $region19: #{fwi_loss.1} parent=0 // pred_check_branch
    %162 = sbr.rel (%p160) target = $region21
  $region20: #{fwi_loss.1} parent=0 // pred_region
    %v163 = vld [vmem:[#allocation2] sm:$0xf]
    %165 = vst [vmem:[#allocation1] ss:$4 sm:$0xff] %v163
    %v166 = vld.sshfl [vmem:[#allocation1] sm:$0xff pattern:$0x73625140]
    %v167 = vld.sshfl [vmem:[#allocation1 + $0x8] sm:$0xff pattern:$0x73625140]
    %v170 = vsel %vm155, %v166, 0.0
    %v171 = vrot.slane %v170, 4
    %v172 = vadd.f32 %v170, %v171
    %v173 = vrot.slane %v172, 2
    %v174 = vadd.f32 %v172, %v173
    %v175 = vrot.slane %v174, 1
    %v176 = vadd.f32 %v174, %v175
    %v177 = vsel %vm155, %v167, 0.0
    %v178 = vrot.slane %v177, 4
    %v179 = vadd.f32 %v177, %v178
    %v180 = vrot.slane %v179, 2
    %v181 = vadd.f32 %v179, %v180
    %v182 = vrot.slane %v181, 1
    %v183 = vadd.f32 %v181, %v182
    %v184 = vld [vmem:[#allocation3] sm:$0xf]
    %186 = vst [vmem:[#allocation1] ss:$4 sm:$0xff] %v184
    %v187 = vld.sshfl [vmem:[#allocation1] sm:$0xff pattern:$0x73625140]
    %v188 = vld.sshfl [vmem:[#allocation1 + $0x8] sm:$0xff pattern:$0x73625140]
    %v191 = vsel %vm155, %v187, 0.0
    %v192 = vrot.slane %v191, 4
    %v193 = vadd.f32 %v191, %v192
    %v194 = vrot.slane %v193, 2
    %v195 = vadd.f32 %v193, %v194
    %v196 = vrot.slane %v195, 1
    %v197 = vadd.f32 %v195, %v196
    %v198 = vsel %vm155, %v188, 0.0
    %v199 = vrot.slane %v198, 4
    %v200 = vadd.f32 %v198, %v199
    %v201 = vrot.slane %v200, 2
    %v202 = vadd.f32 %v200, %v201
    %v203 = vrot.slane %v202, 1
    %v204 = vadd.f32 %v202, %v203
    %vm205 = vcmask 1040384
    %v206 = vsel %vm205, %v176, %v197
    %v207 = vsel %vm205, %v183, %v204
    %v210 = vrot.slane %v207, 6
    %v211 = vsel %vm155, %v206, %v210
    %213 = vst [vmem:[%s3] sm:$0xf] %v211
  $region21: #{fwi_loss.1} parent=0 // pred_fallthru
    _
  // Predicated region
  $region22: #{fwi_loss.1} parent=0 // pred_check
    _
  $region23: #{fwi_loss.1} parent=0 // pred_check_branch
    %215 = sbr.rel (0) target = $region25
  $region24: #{fwi_loss.1} parent=0 // pred_region
    _
  $region25: #{fwi_loss.1} parent=0 // pred_fallthru
    _
  // Predicated region
  $region26: #{fwi_loss.1} parent=0 // pred_check
    _
  $region27: #{fwi_loss.1} parent=0 // pred_check_branch
    %217 = sbr.rel (0) target = $region29
  $region28: #{fwi_loss.1} parent=0 // pred_region
    _
  $region29: #{fwi_loss.1} parent=0 // pred_fallthru
    _

</llo_original>
